<compile_context>
chip_gen: v7x
topology: tpu7x:2x2x1
jax: 0.10.0
libtpu: 0.0.40
codegen_flags: <defaults>
</compile_context>

<pallas_src>
import jax
import jax.numpy as jnp
from jax import lax
from jax.experimental import pallas as pl
from jax.experimental.pallas import tpu as pltpu


def _round8(x):
    return ((x + 7) // 8) * 8


def _make_vi_lda_kernel(D, V, tile_d, tile_v):
    mask_docs = (D % tile_d) != 0
    mask_vocab = (V % tile_v) != 0

    def kernel(post_ref, sp_ref, ttowt_ref, unorm_ref, f1_ref, ent_ref):
        j = pl.program_id(1)

        @pl.when(j == 0)
        def _init():
            unorm_ref[...] = jnp.zeros_like(unorm_ref)
            f1_ref[...] = jnp.zeros_like(f1_ref)
            ent_ref[...] = jnp.zeros_like(ent_ref)

        pt = post_ref[...]            # (Dt, T, Vt)  topic on sublanes, vocab on lanes
        sp = sp_ref[...]              # (Dt, Vt)
        ttowt = ttowt_ref[...]        # (T, Vt)      exp_log_ttowt, used directly

        if mask_docs or mask_vocab:
            # Tail tiles read out-of-bounds garbage; zero it so every invalid
            # (doc, vocab) cell contributes exactly 0 (softmax of zeros stays finite).
            valid = None
            if mask_docs:
                ids_d = (lax.broadcasted_iota(jnp.int32, (tile_d, tile_v), 0)
                         + pl.program_id(0) * tile_d)
                valid = ids_d < D
            if mask_vocab:
                ids_v = (lax.broadcasted_iota(jnp.int32, (tile_d, tile_v), 1)
                         + j * tile_v)
                vv = ids_v < V
                valid = vv if valid is None else jnp.logical_and(valid, vv)
                tt_ids = (lax.broadcasted_iota(jnp.int32, ttowt.shape, 1)
                          + j * tile_v)
                ttowt = jnp.where(tt_ids < V, ttowt, 0.0)
            pt = jnp.where(valid[:, None, :], pt, 0.0)
            sp = jnp.where(valid, sp, 0.0)

        # Softmax pieces over topic (sublane axis); only (Dt,Vt)-sized reductions
        # are materialized — e is the single big (Dt,T,Vt) live temporary.
        m = jnp.max(pt, axis=1)                       # (Dt, Vt)
        e = jnp.exp(pt - m[:, None, :])               # (Dt, T, Vt)
        z = jnp.sum(e, axis=1)                        # (Dt, Vt)  partition function (>= 1)
        g = sp / z                                    # (Dt, Vt)  sp-weighted 1/Z
        ept = jnp.sum(e * pt, axis=1)                 # (Dt, Vt)  sum_t e*pt (entropy)
        h = jnp.sum(e * ttowt[None, :, :], axis=1)    # (Dt, Vt)  sum_t e*ttowt (f1)
        # TODO(synk): on v6e/v7x the ttowt contraction (and the unorm lane reduce)
        # could be pushed to the idle MXU via a batched dot_general to relieve the
        # XLU sublane reduces; verify with a bundle dump before committing.

        # decon numerator: unorm[d, t] = sum_v softmax(pt)[d, t, v] * sp[d, v]
        unorm_ref[...] += jnp.sum(e * g[:, None, :], axis=2)            # (Dt, T)
        # f1[d] = sum_v g * sum_t e * exp_log_ttowt
        f1_ref[...] += jnp.sum(g * h, axis=1, keepdims=True)            # (Dt, 1)
        # entropy, exact logZ form:
        #   sp * (-sum_t p log p) = sp*(log z + m) - g * sum_t e*pt
        ent_ref[...] += jnp.sum(sp * (jnp.log(z) + m) - g * ept,
                                axis=1, keepdims=True)                  # (Dt, 1)

    return kernel


def _choose_tiles(D, T, V, budget_bytes):
    """Pick (tile_d, tile_v).

    Approximate live VMEM per (doc, vocab) cell (f32): double-buffered post
    (2*T) + ~3 (T,)-sized temporaries + double-buffered sp and a few (1,)-sized
    temporaries ≈ 4*(5*T + 8) bytes.  Doc tiles are multiples of 8 (docs sit on
    sublanes for outputs); vocab tiles are multiples of 128 or the full V.
    """
    unit = 4 * (5 * T + 8)

    docs_full_v = budget_bytes // (unit * V)
    if docs_full_v >= 8 or V <= 128:
        tile_v = V
        tile_d = max(8, (docs_full_v // 8) * 8)
        tile_d = min(tile_d, _round8(D))
        if tile_d >= D:
            tile_d = D
    else:
        # Large vocab: tile the vocab axis too (exact — the topic softmax is
        # independent per vocab column; partials accumulate in the output refs).
        tile_d = min(_round8(D), 64)
        if tile_d >= D:
            tile_d = D
        tile_v = (budget_bytes // (unit * max(tile_d, 8)) // 128) * 128
        while tile_v < 128 and tile_d > 8:
            tile_d = max(8, _round8(tile_d // 2))
            tile_v = (budget_bytes // (unit * tile_d) // 128) * 128
        tile_v = max(128, tile_v)
        if tile_v >= V:
            tile_v = V

    # Even doc-step count keeps both v7x TensorCores loaded.  Achieve it by
    # shrinking the tile (never by padding docs — padded steps are pure waste
    # on single-TC v5e/v6e).
    d_steps = pl.cdiv(D, tile_d)
    if tile_d != D and d_steps > 1 and d_steps % 2 == 1:
        cand = _round8(pl.cdiv(D, d_steps + 1))
        if 8 <= cand <= tile_d and pl.cdiv(D, cand) % 2 == 0:
            tile_d = cand
    return tile_d, tile_v


def vi_lda_core(post_topic_tv, sp_count, exp_log_ttowt,
                *, work_budget_bytes=16 * 1024 * 1024):
    """post_topic_tv: (D, T, V); sp_count: (D, V); exp_log_ttowt: (T, V).

    Returns (f1 per doc, entropy per doc, unorm (D, T)).
    """
    D, T, V = post_topic_tv.shape
    assert sp_count.shape == (D, V)
    assert exp_log_ttowt.shape == (T, V)

    tile_d, tile_v = _choose_tiles(D, T, V, work_budget_bytes)
    d_steps = pl.cdiv(D, tile_d)
    v_steps = pl.cdiv(V, tile_v)

    kernel = _make_vi_lda_kernel(D, V, tile_d, tile_v)

    cost = pl.CostEstimate(
        flops=10 * D * T * V,
        transcendentals=D * T * V + D * V,
        bytes_accessed=4 * (D * T * V + D * V + d_steps * T * V + D * (T + 2)),
    )

    unorm, f1_col, ent_col = pl.pallas_call(
        kernel,
        out_shape=(jax.ShapeDtypeStruct((D, T), jnp.float32),
                   jax.ShapeDtypeStruct((D, 1), jnp.float32),
                   jax.ShapeDtypeStruct((D, 1), jnp.float32)),
        grid=(d_steps, v_steps),
        in_specs=[
            pl.BlockSpec((tile_d, T, tile_v), lambda i, j: (i, 0, j)),
            pl.BlockSpec((tile_d, tile_v), lambda i, j: (i, j)),
            pl.BlockSpec((T, tile_v), lambda i, j: (0, j)),
        ],
        out_specs=(
            pl.BlockSpec((tile_d, T), lambda i, j: (i, 0)),   # accumulated over j
            pl.BlockSpec((tile_d, 1), lambda i, j: (i, 0)),
            pl.BlockSpec((tile_d, 1), lambda i, j: (i, 0)),
        ),
        compiler_params=pltpu.CompilerParams(
            dimension_semantics=("parallel", "arbitrary"),
            # 40 MiB fits every generation (v7x physical is 64 MiB/TC) and leaves
            # headroom over the ~16 MiB working-set budget used for tiling.
            vmem_limit_bytes=40 * 1024 * 1024,
        ),
        cost_estimate=cost,
    )(post_topic_tv.astype(jnp.float32),
      sp_count.astype(jnp.float32),
      exp_log_ttowt.astype(jnp.float32))

    return f1_col[:, 0], ent_col[:, 0], unorm


def _decon_from_unorm(unorm, B):
    CT = unorm / (unorm.sum(-1, keepdims=True) + 1e-20)
    D = CT.shape[1]
    d_by_b = D // B
    cols = []
    for i in range(B - 1):
        cols.append(CT[:, i * d_by_b:(i + 1) * d_by_b].sum(axis=1))
    cols.append(CT[:, (B - 1) * d_by_b:].sum(axis=1))
    return jnp.stack(cols, axis=1)


def vi_lda_forward(post_topic_dtv, sp_count, exp_log_ttowt, exp_log_dtot,
                   ref, kernel_mat, partition, IRIS_prop, weight, weight2):
    """Forward pass; post_topic_dtv is the parameter stored in (doc, topic, vocab)
    hot layout (store it this way upstream — no transpose/pad in the hot path)."""
    f1_pd, ent_pd, unorm = vi_lda_core(post_topic_dtv, sp_count, exp_log_ttowt)
    f1 = f1_pd.mean()
    ent = ent_pd.mean()
    # f2 folded algebraically through unorm (exact):
    #   sum_v sp*post contracted with exp_log_dtot == sum_t unorm * exp_log_dtot
    f2 = (unorm * exp_log_dtot).sum(-1).mean()

    # exp_log_like_f3: variable-sized per-partition Laplacian traces (tiny glue).
    # TODO(synk): per-partition graph-Laplacian loop stays in plain JAX (ragged
    # block sizes driven by a pandas-style partition table).
    B = ref.shape[0]
    domain_prob = _decon_from_unorm(unorm, B)
    loss3 = jnp.float32(0.0)
    for i, kern in enumerate(kernel_mat):
        start, end = partition[i]
        c = domain_prob[start:end, :]
        adj = (kern > 0).astype(jnp.float32)
        L = jnp.diag(adj.sum(0)) - adj
        loss3 = loss3 + jnp.trace(c.T @ L @ c)
    loss3 = loss3 / domain_prob.shape[0]

    # regularize: || IRIS_prop - decon(IRIS_prop.shape[1]) ||_F
    CT2 = _decon_from_unorm(unorm, IRIS_prop.shape[1])
    reg = jnp.sqrt(jnp.sum((IRIS_prop - CT2) ** 2))

    return weight2 * loss3 + 100.0 * reg - weight * (f1 + f2 + ent)


# ----------------------------- pure-JAX references -----------------------------

def vi_lda_core_ref(post_dtv, sp, ttowt):
    post = jax.nn.softmax(post_dtv, axis=1)                      # softmax over topic
    unorm = jnp.einsum('dtv,dv->dt', post, sp)
    f1 = jnp.einsum('dtv,tv,dv->d', post, ttowt, sp)
    ent = jnp.sum(sp * jnp.sum(-post * jnp.log(post + 1e-20), axis=1), axis=1)
    return f1, ent, unorm


def vi_lda_forward_ref(post_topic, sp_count, exp_log_ttowt, exp_log_dtot,
                       ref, kernel_mat, partition, IRIS_prop, weight, weight2):
    """Pure-JAX reference mirroring the PyTorch forward (post_topic is (D, V, T))."""
    post = jax.nn.softmax(post_topic, axis=-1)
    f1 = (sp_count * jnp.sum(post * jnp.swapaxes(exp_log_ttowt, -2, -1)[None],
                             axis=-1)).sum(1).mean()
    f2 = (sp_count * jnp.sum(post * exp_log_dtot[:, None, :],
                             axis=-1)).sum(1).mean()
    ent = ((-post * jnp.log(post + 1e-20)).sum(-1) * sp_count).sum(1).mean()
    unorm = (post * sp_count[:, :, None]).sum(1)

    B = ref.shape[0]
    dp = _decon_from_unorm(unorm, B)
    loss3 = jnp.float32(0.0)
    for i, kern in enumerate(kernel_mat):
        s, e = partition[i]
        c = dp[s:e, :]
        adj = (kern > 0).astype(jnp.float32)
        L = jnp.diag(adj.sum(0)) - adj
        loss3 = loss3 + jnp.trace(c.T @ L @ c)
    loss3 = loss3 / dp.shape[0]
    CT2 = _decon_from_unorm(unorm, IRIS_prop.shape[1])
    reg = jnp.sqrt(jnp.sum((IRIS_prop - CT2) ** 2))
    return weight2 * loss3 + 100.0 * reg - weight * (f1 + f2 + ent)


if __name__ == "__main__":
    key = jax.random.PRNGKey(0)
    doc_size, vocal_size, topic_size = 16, 32, 8
    B_ref, B_iris = 4, 2

    k1, k2, k3, k4, k5, k6, k7, k8 = jax.random.split(key, 8)
    # Module-layout parameter (doc, vocab, topic); the kernel path stores/uses
    # the (doc, topic, vocab) layout — transposed once at setup, not per forward.
    initial_topic = jax.random.normal(k1, (doc_size, vocal_size, topic_size),
                                      jnp.float32)
    post_dtv = jnp.transpose(initial_topic, (0, 2, 1))
    sp_count = jax.random.uniform(k2, (doc_size, vocal_size), jnp.float32) * 5.0
    exp_log_ttowt = jax.random.normal(k3, (topic_size, vocal_size), jnp.float32)
    exp_log_dtot = jax.random.normal(k4, (doc_size, topic_size), jnp.float32)
    ref = jax.random.uniform(k5, (B_ref, vocal_size), jnp.float32) + 0.1
    IRIS_prop = jax.random.uniform(k6, (doc_size, B_iris), jnp.float32)
    # Two spatial partitions of the 16 docs, each with an 8x8 kernel matrix.
    partition = [(0, 8), (8, 16)]
    kernel_mat = [
        jax.random.uniform(k7, (8, 8), jnp.float32) - 0.5,
        jax.random.uniform(k8, (8, 8), jnp.float32) - 0.5,
    ]
    weight, weight2 = 0.5, 0.3

    out = vi_lda_forward(post_dtv, sp_count, exp_log_ttowt, exp_log_dtot,
                         ref, kernel_mat, partition, IRIS_prop, weight, weight2)
    out = jax.block_until_ready(out)

    out_ref = vi_lda_forward_ref(initial_topic, sp_count, exp_log_ttowt,
                                 exp_log_dtot, ref, kernel_mat, partition,
                                 IRIS_prop, weight, weight2)
    assert jnp.allclose(out, out_ref, rtol=1e-4, atol=1e-3), (out, out_ref)

    # Secondary check: awkward shapes + tiny budget force the 2-D (doc, vocab)
    # grid, doc-tail masking, and vocab-tail masking.
    D2, V2, T2 = 20, 160, 8
    kk1, kk2 = jax.random.split(jax.random.PRNGKey(1), 2)
    post2 = jax.random.normal(kk1, (D2, T2, V2), jnp.float32)
    sp2 = jax.random.uniform(kk2, (D2, V2), jnp.float32) * 3.0
    tt2 = jax.random.normal(jax.random.PRNGKey(2), (T2, V2), jnp.float32)
    f1k, entk, unk = vi_lda_core(post2, sp2, tt2, work_budget_bytes=200_000)
    f1k = jax.block_until_ready(f1k)
    f1r, entr, unr = vi_lda_core_ref(post2, sp2, tt2)
    assert jnp.allclose(f1k, f1r, rtol=1e-4, atol=1e-2), (f1k, f1r)
    assert jnp.allclose(entk, entr, rtol=1e-4, atol=1e-2), (entk, entr)
    assert jnp.allclose(unk, unr, rtol=1e-4, atol=1e-2)

    print("KERNEL_OK")
</pallas_src>

<mosaic_0001>
module attributes {stable_mosaic.version = 11 : i64} {
  func.func @kernel(%arg0: i32, %arg1: i32, %arg2: memref<16x8x32xf32, #tpu.memory_space<vmem>>, %arg3: memref<16x32xf32, #tpu.memory_space<vmem>>, %arg4: memref<8x32xf32, #tpu.memory_space<vmem>>, %arg5: memref<16x8xf32, #tpu.memory_space<vmem>>, %arg6: memref<16x1xf32, #tpu.memory_space<vmem>>, %arg7: memref<16x1xf32, #tpu.memory_space<vmem>>) attributes {dimension_semantics = [#tpu.dimension_semantics<parallel>, #tpu.dimension_semantics<arbitrary>], iteration_bounds = array<i64: 1, 1>, scalar_prefetch = 0 : i64, scratch_operands = 0 : i64, tpu.core_type = #tpu.core_type<tc>, window_params = [{transform_indices = @transform_0, window_bounds = array<i64: 16, 8, 32>}, {transform_indices = @transform_1, window_bounds = array<i64: 16, 32>}, {transform_indices = @transform_2, window_bounds = array<i64: 8, 32>}, {transform_indices = @transform_3, window_bounds = array<i64: 16, 8>}, {transform_indices = @transform_4, window_bounds = array<i64: 16, 1>}, {transform_indices = @transform_5, window_bounds = array<i64: 16, 1>}]} {
    %c0_i32 = arith.constant 0 : i32
    %0 = arith.cmpi eq, %arg1, %c0_i32 : i32
    %1 = arith.extui %0 : i1 to i32
    %c0_i32_0 = arith.constant 0 : i32
    %2 = arith.cmpi ne, %1, %c0_i32_0 : i32
    scf.if %2 {
      %cst_25 = arith.constant 0.000000e+00 : f32
      %42 = vector.broadcast %cst_25 : f32 to vector<16x8xf32>
      %c0_26 = arith.constant 0 : index
      %c0_27 = arith.constant 0 : index
      %43 = vector.load %arg5[%c0_26, %c0_27] : memref<16x8xf32, #tpu.memory_space<vmem>>, vector<16x8xf32>
      tpu.vector_store %arg5[%c0_26, %c0_27], %42 {strides = array<i32>} : memref<16x8xf32, #tpu.memory_space<vmem>>, vector<16x8xf32>,
      %cst_28 = arith.constant 0.000000e+00 : f32
      %44 = vector.broadcast %cst_28 : f32 to vector<16x1xf32>
      %c0_29 = arith.constant 0 : index
      %c0_30 = arith.constant 0 : index
      %45 = vector.load %arg6[%c0_29, %c0_30] : memref<16x1xf32, #tpu.memory_space<vmem>>, vector<16x1xf32>
      tpu.vector_store %arg6[%c0_29, %c0_30], %44 {strides = array<i32>} : memref<16x1xf32, #tpu.memory_space<vmem>>, vector<16x1xf32>,
      %cst_31 = arith.constant 0.000000e+00 : f32
      %46 = vector.broadcast %cst_31 : f32 to vector<16x1xf32>
      %c0_32 = arith.constant 0 : index
      %c0_33 = arith.constant 0 : index
      %47 = vector.load %arg7[%c0_32, %c0_33] : memref<16x1xf32, #tpu.memory_space<vmem>>, vector<16x1xf32>
      tpu.vector_store %arg7[%c0_32, %c0_33], %46 {strides = array<i32>} : memref<16x1xf32, #tpu.memory_space<vmem>>, vector<16x1xf32>,
    } else {
    }
    %c0 = arith.constant 0 : index
    %c0_1 = arith.constant 0 : index
    %c0_2 = arith.constant 0 : index
    %3 = vector.load %arg2[%c0, %c0_1, %c0_2] : memref<16x8x32xf32, #tpu.memory_space<vmem>>, vector<16x8x32xf32>
    %c0_3 = arith.constant 0 : index
    %c0_4 = arith.constant 0 : index
    %4 = vector.load %arg3[%c0_3, %c0_4] : memref<16x32xf32, #tpu.memory_space<vmem>>, vector<16x32xf32>
    %c0_5 = arith.constant 0 : index
    %c0_6 = arith.constant 0 : index
    %5 = vector.load %arg4[%c0_5, %c0_6] : memref<8x32xf32, #tpu.memory_space<vmem>>, vector<8x32xf32>
    %cst = arith.constant dense<0xFF800000> : vector<16x32xf32>
    %6 = vector.multi_reduction <maximumf>, %3, %cst [1] : vector<16x8x32xf32> to vector<16x32xf32>
    %7 = vector.shape_cast %6 : vector<16x32xf32> to vector<16x1x32xf32>
    %8 = vector.broadcast %7 : vector<16x1x32xf32> to vector<16x8x32xf32>
    %9 = arith.subf %3, %8 : vector<16x8x32xf32>
    %10 = math.exp %9 : vector<16x8x32xf32>
    %cst_7 = arith.constant dense<0.000000e+00> : vector<16x32xf32>
    %11 = vector.multi_reduction <add>, %10, %cst_7 [1] : vector<16x8x32xf32> to vector<16x32xf32>
    %12 = arith.divf %4, %11 : vector<16x32xf32>
    %13 = arith.mulf %10, %3 : vector<16x8x32xf32>
    %cst_8 = arith.constant dense<0.000000e+00> : vector<16x32xf32>
    %14 = vector.multi_reduction <add>, %13, %cst_8 [1] : vector<16x8x32xf32> to vector<16x32xf32>
    %15 = vector.shape_cast %5 : vector<8x32xf32> to vector<1x8x32xf32>
    %16 = vector.broadcast %15 : vector<1x8x32xf32> to vector<16x8x32xf32>
    %17 = arith.mulf %10, %16 : vector<16x8x32xf32>
    %cst_9 = arith.constant dense<0.000000e+00> : vector<16x32xf32>
    %18 = vector.multi_reduction <add>, %17, %cst_9 [1] : vector<16x8x32xf32> to vector<16x32xf32>
    %c0_10 = arith.constant 0 : index
    %c0_11 = arith.constant 0 : index
    %19 = vector.load %arg5[%c0_10, %c0_11] : memref<16x8xf32, #tpu.memory_space<vmem>>, vector<16x8xf32>
    %20 = vector.shape_cast %12 : vector<16x32xf32> to vector<16x1x32xf32>
    %21 = vector.broadcast %20 : vector<16x1x32xf32> to vector<16x8x32xf32>
    %22 = arith.mulf %10, %21 : vector<16x8x32xf32>
    %cst_12 = arith.constant dense<0.000000e+00> : vector<16x8xf32>
    %23 = vector.multi_reduction <add>, %22, %cst_12 [2] : vector<16x8x32xf32> to vector<16x8xf32>
    %24 = arith.addf %19, %23 : vector<16x8xf32>
    %c0_13 = arith.constant 0 : index
    %c0_14 = arith.constant 0 : index
    %25 = vector.load %arg5[%c0_13, %c0_14] : memref<16x8xf32, #tpu.memory_space<vmem>>, vector<16x8xf32>
    tpu.vector_store %arg5[%c0_13, %c0_14], %24 {strides = array<i32>} : memref<16x8xf32, #tpu.memory_space<vmem>>, vector<16x8xf32>,
    %c0_15 = arith.constant 0 : index
    %c0_16 = arith.constant 0 : index
    %26 = vector.load %arg6[%c0_15, %c0_16] : memref<16x1xf32, #tpu.memory_space<vmem>>, vector<16x1xf32>
    %27 = arith.mulf %12, %18 : vector<16x32xf32>
    %cst_17 = arith.constant dense<0.000000e+00> : vector<16xf32>
    %28 = vector.multi_reduction <add>, %27, %cst_17 [1] : vector<16x32xf32> to vector<16xf32>
    %29 = vector.shape_cast %28 : vector<16xf32> to vector<16x1xf32>
    %30 = arith.addf %26, %29 : vector<16x1xf32>
    %c0_18 = arith.constant 0 : index
    %c0_19 = arith.constant 0 : index
    %31 = vector.load %arg6[%c0_18, %c0_19] : memref<16x1xf32, #tpu.memory_space<vmem>>, vector<16x1xf32>
    tpu.vector_store %arg6[%c0_18, %c0_19], %30 {strides = array<i32>} : memref<16x1xf32, #tpu.memory_space<vmem>>, vector<16x1xf32>,
    %c0_20 = arith.constant 0 : index
    %c0_21 = arith.constant 0 : index
    %32 = vector.load %arg7[%c0_20, %c0_21] : memref<16x1xf32, #tpu.memory_space<vmem>>, vector<16x1xf32>
    %33 = math.log %11 : vector<16x32xf32>
    %34 = arith.addf %33, %6 : vector<16x32xf32>
    %35 = arith.mulf %4, %34 : vector<16x32xf32>
    %36 = arith.mulf %12, %14 : vector<16x32xf32>
    %37 = arith.subf %35, %36 : vector<16x32xf32>
    %cst_22 = arith.constant dense<0.000000e+00> : vector<16xf32>
    %38 = vector.multi_reduction <add>, %37, %cst_22 [1] : vector<16x32xf32> to vector<16xf32>
    %39 = vector.shape_cast %38 : vector<16xf32> to vector<16x1xf32>
    %40 = arith.addf %32, %39 : vector<16x1xf32>
    %c0_23 = arith.constant 0 : index
    %c0_24 = arith.constant 0 : index
    %41 = vector.load %arg7[%c0_23, %c0_24] : memref<16x1xf32, #tpu.memory_space<vmem>>, vector<16x1xf32>
    tpu.vector_store %arg7[%c0_23, %c0_24], %40 {strides = array<i32>} : memref<16x1xf32, #tpu.memory_space<vmem>>, vector<16x1xf32>,
    return
  }
  func.func @transform_0(%arg0: i32, %arg1: i32) -> (i32, i32, i32) {
    %c0_i32 = arith.constant 0 : i32
    %c0_i32_0 = arith.constant 0 : i32
    return %arg0, %c0_i32, %arg1 : i32, i32, i32
  }
  func.func @transform_1(%arg0: i32, %arg1: i32) -> (i32, i32) {
    %c0_i32 = arith.constant 0 : i32
    return %arg0, %arg1 : i32, i32
  }
  func.func @transform_2(%arg0: i32, %arg1: i32) -> (i32, i32) {
    %c0_i32 = arith.constant 0 : i32
    %c0_i32_0 = arith.constant 0 : i32
    return %c0_i32, %arg1 : i32, i32
  }
  func.func @transform_3(%arg0: i32, %arg1: i32) -> (i32, i32) {
    %c0_i32 = arith.constant 0 : i32
    %c0_i32_0 = arith.constant 0 : i32
    return %arg0, %c0_i32 : i32, i32
  }
  func.func @transform_4(%arg0: i32, %arg1: i32) -> (i32, i32) {
    %c0_i32 = arith.constant 0 : i32
    %c0_i32_0 = arith.constant 0 : i32
    return %arg0, %c0_i32 : i32, i32
  }
  func.func @transform_5(%arg0: i32, %arg1: i32) -> (i32, i32) {
    %c0_i32 = arith.constant 0 : i32
    %c0_i32_0 = arith.constant 0 : i32
    return %arg0, %c0_i32 : i32, i32
  }
}

</mosaic_0001>

<llo_original>
// kernel: tpu_custom_call.1
$region0: #{tpu_custom_call.1}
  #allocation0 [shape = 'u32[]', space=smem, size = 0x4, offset = 0x4, fixed_abs, tag = 'smem constant byte address 0x4 - core index']
  #allocation1 [shape = 'u32[144,128]{1,0:T(1,128)}', space=vmem, size = 0x12000, scoped, tag = 'internal scratch']
  %s0 = inlined_call_operand.hbm [shape: f32[16,8,32], index: 0, kind: input, shape index: {}]
  %s1 = inlined_call_operand.hbm [shape: f32[16,32], index: 1, kind: input, shape index: {}]
  %s2 = inlined_call_operand.hbm [shape: f32[8,32], index: 2, kind: input, shape index: {}]
  %s3 = inlined_call_operand.vmem [shape: f32[16,8], index: 3, kind: output, shape index: {0}]
  %s4 = inlined_call_operand.vmem [shape: f32[16,1], index: 4, kind: output, shape index: {1}]
  %s5 = inlined_call_operand.vmem [shape: f32[16,1], index: 5, kind: output, shape index: {2}]
  %6 = xla_tuple %s3, %s4, %s5
  %s7 = sld [smem:[#allocation0]]
  $region54: #{tpu_custom_call.1} parent=0
    _
  %s9 = ssub.s32 1, %s7
  %s10 = scalar_select 0, %s9, %s7
  $region1: #{tpu_custom_call.1} parent=0
    #allocation2 [shape = 'u8[65536]{0}', space=vmem, size = 0x10000, scoped, tag = 'input window, operand 0, single buffered']
    #allocation3 [shape = 's32[1]{0}', space=sflag, size = 0x4, scoped, tag = 'scoped memory for tpu_custom_call.1']
    #allocation4 [shape = 'u8[8192]{0}', space=vmem, size = 0x2000, scoped, tag = 'input window, operand 1, single buffered']
    #allocation5 [shape = 's32[1]{0}', space=sflag, size = 0x4, scoped, tag = 'scoped memory for tpu_custom_call.1']
    #allocation6 [shape = 'u8[4096]{0}', space=vmem, size = 0x1000, scoped, tag = 'input window, operand 2, single buffered']
    %11 = vsyncpa [#allocation3], 0
    %12 = vsyncpa [#allocation5], 0
    // Predicated region
    $region2: #{tpu_custom_call.1} parent=1 // pred_check
      _
    $region3: #{tpu_custom_call.1} parent=1 // pred_check_branch
      %14 = sbr.rel (0) target = $region5
    $region4: #{tpu_custom_call.1} parent=1 // pred_region
      %s16 = ssub.s32 2048, 2048
      %17 = vsyncadd [#allocation3], %s16
      %s18 = sshll.u32 [#allocation2], 4
      %s19 = int_to_ptr.vmem [resolvable:$true] %s18
      %24 = dma.hbm_to_vmem [thread:$0]  %s0, 2048, %s19, [#allocation3], 128, 128, 8
    $region5: #{tpu_custom_call.1} parent=1 // pred_fallthru
      _
    // Predicated region
    $region6: #{tpu_custom_call.1} parent=1 // pred_check
      _
    $region7: #{tpu_custom_call.1} parent=1 // pred_check_branch
      %26 = sbr.rel (0) target = $region9
    $region8: #{tpu_custom_call.1} parent=1 // pred_region
      %s28 = ssub.s32 256, 256
      %29 = vsyncadd [#allocation5], %s28
      %s30 = sshll.u32 [#allocation4], 4
      %s31 = int_to_ptr.vmem [resolvable:$true] %s30
      %36 = dma.hbm_to_vmem [thread:$0]  %s1, 256, %s31, [#allocation5], 128, 128, 8
    $region9: #{tpu_custom_call.1} parent=1 // pred_fallthru
      _
    // Predicated region
    $region10: #{tpu_custom_call.1} parent=1 // pred_check
      _
    $region11: #{tpu_custom_call.1} parent=1 // pred_check_branch
      %38 = sbr.rel (0) target = $region13
    $region12: #{tpu_custom_call.1} parent=1 // pred_region
      %s40 = ssub.s32 128, 128
      %41 = vsyncadd [#allocation5], %s40
      %s43 = sshll.u32 [#allocation6], 4
      %s44 = int_to_ptr.vmem [resolvable:$true] %s43
      %46 = dma.hbm_to_vmem [thread:$0]  %s2, 128, %s44, [#allocation5]
    $region13: #{tpu_custom_call.1} parent=1 // pred_fallthru
      _
    // Predicated region
    $region14: #{tpu_custom_call.1} parent=1 // pred_check
      _
    $region15: #{tpu_custom_call.1} parent=1 // pred_check_branch
      %48 = sbr.rel (0) target = $region17
    $region16: #{tpu_custom_call.1} parent=1 // pred_region
      %49 = dma.done [#allocation3], 2048
    $region17: #{tpu_custom_call.1} parent=1 // pred_fallthru
      _
    // Predicated region
    $region18: #{tpu_custom_call.1} parent=1 // pred_check
      _
    $region19: #{tpu_custom_call.1} parent=1 // pred_check_branch
      %51 = sbr.rel (0) target = $region21
    $region20: #{tpu_custom_call.1} parent=1 // pred_region
      %52 = dma.done [#allocation5], 256
    $region21: #{tpu_custom_call.1} parent=1 // pred_fallthru
      _
    // Predicated region
    $region22: #{tpu_custom_call.1} parent=1 // pred_check
      _
    $region23: #{tpu_custom_call.1} parent=1 // pred_check_branch
      %54 = sbr.rel (0) target = $region25
    $region24: #{tpu_custom_call.1} parent=1 // pred_region
      %55 = dma.done [#allocation5], 128
    $region25: #{tpu_custom_call.1} parent=1 // pred_fallthru
      _
    %p56 = scmp.eq.s32.totalorder 0, 0
    // Predicated region
    $region26: #{tpu_custom_call.1} parent=1 // pred_check
      %p57 = pneg %p56
    $region27: #{tpu_custom_call.1} parent=1 // pred_check_branch
      %59 = sbr.rel (%p57) target = $region29
    $region28: #{tpu_custom_call.1} parent=1 // pred_region
      %vm60 = vcmask 64512
      %61 = vst.msk [vmem:[%s3] sm:$0xff] %vm60, 0.0
      %62 = vst.msk [vmem:[%s3 + $0x8] sm:$0xff] %vm60, 0.0
      %vm63 = vcmask 7168
      %64 = vst.msk [vmem:[%s4] sm:$0xff] %vm63, 0.0
      %65 = vst.msk [vmem:[%s4 + $0x8] sm:$0xff] %vm63, 0.0
      %66 = vst.msk [vmem:[%s5] sm:$0xff] %vm63, 0.0
      %67 = vst.msk [vmem:[%s5 + $0x8] sm:$0xff] %vm63, 0.0
    $region29: #{tpu_custom_call.1} parent=1 // pred_fallthru
      _
    %v68 = vld [vmem:[#allocation2] sm:$0xff]
    %v69 = vld [vmem:[#allocation2 + $0x8] sm:$0xff]
    %v70 = vld [vmem:[#allocation2 + $0x10] sm:$0xff]
    %v71 = vld [vmem:[#allocation2 + $0x18] sm:$0xff]
    %v72 = vld [vmem:[#allocation2 + $0x20] sm:$0xff]
    %v73 = vld [vmem:[#allocation2 + $0x28] sm:$0xff]
    %v74 = vld [vmem:[#allocation2 + $0x30] sm:$0xff]
    %v75 = vld [vmem:[#allocation2 + $0x38] sm:$0xff]
    %v76 = vld [vmem:[#allocation2 + $0x40] sm:$0xff]
    %v77 = vld [vmem:[#allocation2 + $0x48] sm:$0xff]
    %v78 = vld [vmem:[#allocation2 + $0x50] sm:$0xff]
    %v79 = vld [vmem:[#allocation2 + $0x58] sm:$0xff]
    %v80 = vld [vmem:[#allocation2 + $0x60] sm:$0xff]
    %v81 = vld [vmem:[#allocation2 + $0x68] sm:$0xff]
    %v82 = vld [vmem:[#allocation2 + $0x70] sm:$0xff]
    %v83 = vld [vmem:[#allocation2 + $0x78] sm:$0xff]
    %v84 = vld [vmem:[#allocation4] sm:$0xff]
    %v85 = vld [vmem:[#allocation4 + $0x8] sm:$0xff]
    %v86 = vld [vmem:[#allocation6] sm:$0xff]
    %vm87 = vcmask 261120
    %v88 = vsel %vm87, %v68, -inf
    %v89 = vrot.slane %v88, 4
    %v90 = vmax.f32 %v88, %v89
    %v91 = vrot.slane %v90, 2
    %v92 = vmax.f32 %v90, %v91
    %v93 = vrot.slane %v92, 1
    %v94 = vmax.f32 %v92, %v93
    %v95 = vsel %vm87, %v69, -inf
    %v96 = vrot.slane %v95, 4
    %v97 = vmax.f32 %v95, %v96
    %v98 = vrot.slane %v97, 2
    %v99 = vmax.f32 %v97, %v98
    %v100 = vrot.slane %v99, 1
    %v101 = vmax.f32 %v99, %v100
    %v102 = vsel %vm87, %v70, -inf
    %v103 = vrot.slane %v102, 4
    %v104 = vmax.f32 %v102, %v103
    %v105 = vrot.slane %v104, 2
    %v106 = vmax.f32 %v104, %v105
    %v107 = vrot.slane %v106, 1
    %v108 = vmax.f32 %v106, %v107
    %v109 = vsel %vm87, %v71, -inf
    %v110 = vrot.slane %v109, 4
    %v111 = vmax.f32 %v109, %v110
    %v112 = vrot.slane %v111, 2
    %v113 = vmax.f32 %v111, %v112
    %v114 = vrot.slane %v113, 1
    %v115 = vmax.f32 %v113, %v114
    %v116 = vsel %vm87, %v72, -inf
    %v117 = vrot.slane %v116, 4
    %v118 = vmax.f32 %v116, %v117
    %v119 = vrot.slane %v118, 2
    %v120 = vmax.f32 %v118, %v119
    %v121 = vrot.slane %v120, 1
    %v122 = vmax.f32 %v120, %v121
    %v123 = vsel %vm87, %v73, -inf
    %v124 = vrot.slane %v123, 4
    %v125 = vmax.f32 %v123, %v124
    %v126 = vrot.slane %v125, 2
    %v127 = vmax.f32 %v125, %v126
    %v128 = vrot.slane %v127, 1
    %v129 = vmax.f32 %v127, %v128
    %v130 = vsel %vm87, %v74, -inf
    %v131 = vrot.slane %v130, 4
    %v132 = vmax.f32 %v130, %v131
    %v133 = vrot.slane %v132, 2
    %v134 = vmax.f32 %v132, %v133
    %v135 = vrot.slane %v134, 1
    %v136 = vmax.f32 %v134, %v135
    %v137 = vsel %vm87, %v75, -inf
    %v138 = vrot.slane %v137, 4
    %v139 = vmax.f32 %v137, %v138
    %v140 = vrot.slane %v139, 2
    %v141 = vmax.f32 %v139, %v140
    %v142 = vrot.slane %v141, 1
    %v143 = vmax.f32 %v141, %v142
    %v144 = vsel %vm87, %v76, -inf
    %v145 = vrot.slane %v144, 4
    %v146 = vmax.f32 %v144, %v145
    %v147 = vrot.slane %v146, 2
    %v148 = vmax.f32 %v146, %v147
    %v149 = vrot.slane %v148, 1
    %v150 = vmax.f32 %v148, %v149
    %v151 = vsel %vm87, %v77, -inf
    %v152 = vrot.slane %v151, 4
    %v153 = vmax.f32 %v151, %v152
    %v154 = vrot.slane %v153, 2
    %v155 = vmax.f32 %v153, %v154
    %v156 = vrot.slane %v155, 1
    %v157 = vmax.f32 %v155, %v156
    %v158 = vsel %vm87, %v78, -inf
    %v159 = vrot.slane %v158, 4
    %v160 = vmax.f32 %v158, %v159
    %v161 = vrot.slane %v160, 2
    %v162 = vmax.f32 %v160, %v161
    %v163 = vrot.slane %v162, 1
    %v164 = vmax.f32 %v162, %v163
    %v165 = vsel %vm87, %v79, -inf
    %v166 = vrot.slane %v165, 4
    %v167 = vmax.f32 %v165, %v166
    %v168 = vrot.slane %v167, 2
    %v169 = vmax.f32 %v167, %v168
    %v170 = vrot.slane %v169, 1
    %v171 = vmax.f32 %v169, %v170
    %v172 = vsel %vm87, %v80, -inf
    %v173 = vrot.slane %v172, 4
    %v174 = vmax.f32 %v172, %v173
    %v175 = vrot.slane %v174, 2
    %v176 = vmax.f32 %v174, %v175
    %v177 = vrot.slane %v176, 1
    %v178 = vmax.f32 %v176, %v177
    %v179 = vsel %vm87, %v81, -inf
    %v180 = vrot.slane %v179, 4
    %v181 = vmax.f32 %v179, %v180
    %v182 = vrot.slane %v181, 2
    %v183 = vmax.f32 %v181, %v182
    %v184 = vrot.slane %v183, 1
    %v185 = vmax.f32 %v183, %v184
    %v186 = vsel %vm87, %v82, -inf
    %v187 = vrot.slane %v186, 4
    %v188 = vmax.f32 %v186, %v187
    %v189 = vrot.slane %v188, 2
    %v190 = vmax.f32 %v188, %v189
    %v191 = vrot.slane %v190, 1
    %v192 = vmax.f32 %v190, %v191
    %v193 = vsel %vm87, %v83, -inf
    %v194 = vrot.slane %v193, 4
    %v195 = vmax.f32 %v193, %v194
    %v196 = vrot.slane %v195, 2
    %v197 = vmax.f32 %v195, %v196
    %v198 = vrot.slane %v197, 1
    %v199 = vmax.f32 %v197, %v198
    %v200 = vsub.f32 %v68, %v94
    %v201 = vsub.f32 %v69, %v101
    %v202 = vsub.f32 %v70, %v108
    %v203 = vsub.f32 %v71, %v115
    %v204 = vsub.f32 %v72, %v122
    %v205 = vsub.f32 %v73, %v129
    %v206 = vsub.f32 %v74, %v136
    %v207 = vsub.f32 %v75, %v143
    %v208 = vsub.f32 %v76, %v150
    %v209 = vsub.f32 %v77, %v157
    %v210 = vsub.f32 %v78, %v164
    %v211 = vsub.f32 %v79, %v171
    %v212 = vsub.f32 %v80, %v178
    %v213 = vsub.f32 %v81, %v185
    %v214 = vsub.f32 %v82, %v192
    %v215 = vsub.f32 %v83, %v199
    %v216 = vmul.f32 %v200, 1.442695
    %v217 = vpow.pop %v216
    %v218 = vmul.f32 %v201, 1.442695
    %v219 = vpow.pop %v218
    %v220 = vmul.f32 %v202, 1.442695
    %v221 = vpow.pop %v220
    %v222 = vmul.f32 %v203, 1.442695
    %v223 = vpow.pop %v222
    %v224 = vmul.f32 %v204, 1.442695
    %v225 = vpow.pop %v224
    %v226 = vmul.f32 %v205, 1.442695
    %v227 = vpow.pop %v226
    %v228 = vmul.f32 %v206, 1.442695
    %v229 = vpow.pop %v228
    %v230 = vmul.f32 %v207, 1.442695
    %v231 = vpow.pop %v230
    %v232 = vmul.f32 %v208, 1.442695
    %v233 = vpow.pop %v232
    %v234 = vmul.f32 %v209, 1.442695
    %v235 = vpow.pop %v234
    %v236 = vmul.f32 %v210, 1.442695
    %v237 = vpow.pop %v236
    %v238 = vmul.f32 %v211, 1.442695
    %v239 = vpow.pop %v238
    %v240 = vmul.f32 %v212, 1.442695
    %v241 = vpow.pop %v240
    %v242 = vmul.f32 %v213, 1.442695
    %v243 = vpow.pop %v242
    %v244 = vmul.f32 %v214, 1.442695
    %v245 = vpow.pop %v244
    %v246 = vmul.f32 %v215, 1.442695
    %v247 = vpow.pop %v246
    %v248 = vsel %vm87, %v217, 0.0
    %v249 = vrot.slane %v248, 4
    %v250 = vadd.f32 %v248, %v249
    %v251 = vrot.slane %v250, 2
    %v252 = vadd.f32 %v250, %v251
    %v253 = vrot.slane %v252, 1
    %v254 = vadd.f32 %v252, %v253
    %v255 = vsel %vm87, %v219, 0.0
    %v256 = vrot.slane %v255, 4
    %v257 = vadd.f32 %v255, %v256
    %v258 = vrot.slane %v257, 2
    %v259 = vadd.f32 %v257, %v258
    %v260 = vrot.slane %v259, 1
    %v261 = vadd.f32 %v259, %v260
    %v262 = vsel %vm87, %v221, 0.0
    %v263 = vrot.slane %v262, 4
    %v264 = vadd.f32 %v262, %v263
    %v265 = vrot.slane %v264, 2
    %v266 = vadd.f32 %v264, %v265
    %v267 = vrot.slane %v266, 1
    %v268 = vadd.f32 %v266, %v267
    %v269 = vsel %vm87, %v223, 0.0
    %v270 = vrot.slane %v269, 4
    %v271 = vadd.f32 %v269, %v270
    %v272 = vrot.slane %v271, 2
    %v273 = vadd.f32 %v271, %v272
    %v274 = vrot.slane %v273, 1
    %v275 = vadd.f32 %v273, %v274
    %v276 = vsel %vm87, %v225, 0.0
    %v277 = vrot.slane %v276, 4
    %v278 = vadd.f32 %v276, %v277
    %v279 = vrot.slane %v278, 2
    %v280 = vadd.f32 %v278, %v279
    %v281 = vrot.slane %v280, 1
    %v282 = vadd.f32 %v280, %v281
    %v283 = vsel %vm87, %v227, 0.0
    %v284 = vrot.slane %v283, 4
    %v285 = vadd.f32 %v283, %v284
    %v286 = vrot.slane %v285, 2
    %v287 = vadd.f32 %v285, %v286
    %v288 = vrot.slane %v287, 1
    %v289 = vadd.f32 %v287, %v288
    %v290 = vsel %vm87, %v229, 0.0
    %v291 = vrot.slane %v290, 4
    %v292 = vadd.f32 %v290, %v291
    %v293 = vrot.slane %v292, 2
    %v294 = vadd.f32 %v292, %v293
    %v295 = vrot.slane %v294, 1
    %v296 = vadd.f32 %v294, %v295
    %v297 = vsel %vm87, %v231, 0.0
    %v298 = vrot.slane %v297, 4
    %v299 = vadd.f32 %v297, %v298
    %v300 = vrot.slane %v299, 2
    %v301 = vadd.f32 %v299, %v300
    %v302 = vrot.slane %v301, 1
    %v303 = vadd.f32 %v301, %v302
    %v304 = vsel %vm87, %v233, 0.0
    %v305 = vrot.slane %v304, 4
    %v306 = vadd.f32 %v304, %v305
    %v307 = vrot.slane %v306, 2
    %v308 = vadd.f32 %v306, %v307
    %v309 = vrot.slane %v308, 1
    %v310 = vadd.f32 %v308, %v309
    %v311 = vsel %vm87, %v235, 0.0
    %v312 = vrot.slane %v311, 4
    %v313 = vadd.f32 %v311, %v312
    %v314 = vrot.slane %v313, 2
    %v315 = vadd.f32 %v313, %v314
    %v316 = vrot.slane %v315, 1
    %v317 = vadd.f32 %v315, %v316
    %v318 = vsel %vm87, %v237, 0.0
    %v319 = vrot.slane %v318, 4
    %v320 = vadd.f32 %v318, %v319
    %v321 = vrot.slane %v320, 2
    %v322 = vadd.f32 %v320, %v321
    %v323 = vrot.slane %v322, 1
    %v324 = vadd.f32 %v322, %v323
    %v325 = vsel %vm87, %v239, 0.0
    %v326 = vrot.slane %v325, 4
    %v327 = vadd.f32 %v325, %v326
    %v328 = vrot.slane %v327, 2
    %v329 = vadd.f32 %v327, %v328
    %v330 = vrot.slane %v329, 1
    %v331 = vadd.f32 %v329, %v330
    %v332 = vsel %vm87, %v241, 0.0
    %v333 = vrot.slane %v332, 4
    %v334 = vadd.f32 %v332, %v333
    %v335 = vrot.slane %v334, 2
    %v336 = vadd.f32 %v334, %v335
    %v337 = vrot.slane %v336, 1
    %v338 = vadd.f32 %v336, %v337
    %v339 = vsel %vm87, %v243, 0.0
    %v340 = vrot.slane %v339, 4
    %v341 = vadd.f32 %v339, %v340
    %v342 = vrot.slane %v341, 2
    %v343 = vadd.f32 %v341, %v342
    %v344 = vrot.slane %v343, 1
    %v345 = vadd.f32 %v343, %v344
    %v346 = vsel %vm87, %v245, 0.0
    %v347 = vrot.slane %v346, 4
    %v348 = vadd.f32 %v346, %v347
    %v349 = vrot.slane %v348, 2
    %v350 = vadd.f32 %v348, %v349
    %v351 = vrot.slane %v350, 1
    %v352 = vadd.f32 %v350, %v351
    %v353 = vsel %vm87, %v247, 0.0
    %v354 = vrot.slane %v353, 4
    %v355 = vadd.f32 %v353, %v354
    %v356 = vrot.slane %v355, 2
    %v357 = vadd.f32 %v355, %v356
    %v358 = vrot.slane %v357, 1
    %v359 = vadd.f32 %v357, %v358
    %vm376 = vcmask 1041409
    %v377 = vsel %vm376, %v261, %v254
    %vm378 = vcmask 1042434
    %v379 = vsel %vm378, %v268, %v377
    %vm380 = vcmask 1043459
    %v381 = vsel %vm380, %v275, %v379
    %vm382 = vcmask 1044484
    %v383 = vsel %vm382, %v282, %v381
    %vm384 = vcmask 1045509
    %v385 = vsel %vm384, %v289, %v383
    %vm386 = vcmask 1046534
    %v387 = vsel %vm386, %v296, %v385
    %vm388 = vcmask 1047559
    %v389 = vsel %vm388, %v303, %v387
    %v390 = vsel %vm376, %v317, %v310
    %v391 = vsel %vm378, %v324, %v390
    %v392 = vsel %vm380, %v331, %v391
    %v393 = vsel %vm382, %v338, %v392
    %v394 = vsel %vm384, %v345, %v393
    %v395 = vsel %vm386, %v352, %v394
    %v396 = vsel %vm388, %v359, %v395
    %v399 = vrcp.pop %v389
    %v400 = vmul.f32 %v84, %v399
    %v401 = vrcp.pop %v396
    %v402 = vmul.f32 %v85, %v401
    %v403 = vmul.f32 %v217, %v68
    %v404 = vmul.f32 %v219, %v69
    %v405 = vmul.f32 %v221, %v70
    %v406 = vmul.f32 %v223, %v71
    %v407 = vmul.f32 %v225, %v72
    %v408 = vmul.f32 %v227, %v73
    %v409 = vmul.f32 %v229, %v74
    %v410 = vmul.f32 %v231, %v75
    %v411 = vmul.f32 %v233, %v76
    %v412 = vmul.f32 %v235, %v77
    %v413 = vmul.f32 %v237, %v78
    %v414 = vmul.f32 %v239, %v79
    %v415 = vmul.f32 %v241, %v80
    %v416 = vmul.f32 %v243, %v81
    %v417 = vmul.f32 %v245, %v82
    %v418 = vmul.f32 %v247, %v83
    %v419 = vsel %vm87, %v403, 0.0
    %v420 = vrot.slane %v419, 4
    %v421 = vadd.f32 %v419, %v420
    %v422 = vrot.slane %v421, 2
    %v423 = vadd.f32 %v421, %v422
    %v424 = vrot.slane %v423, 1
    %v425 = vadd.f32 %v423, %v424
    %v426 = vsel %vm87, %v404, 0.0
    %v427 = vrot.slane %v426, 4
    %v428 = vadd.f32 %v426, %v427
    %v429 = vrot.slane %v428, 2
    %v430 = vadd.f32 %v428, %v429
    %v431 = vrot.slane %v430, 1
    %v432 = vadd.f32 %v430, %v431
    %v433 = vsel %vm87, %v405, 0.0
    %v434 = vrot.slane %v433, 4
    %v435 = vadd.f32 %v433, %v434
    %v436 = vrot.slane %v435, 2
    %v437 = vadd.f32 %v435, %v436
    %v438 = vrot.slane %v437, 1
    %v439 = vadd.f32 %v437, %v438
    %v440 = vsel %vm87, %v406, 0.0
    %v441 = vrot.slane %v440, 4
    %v442 = vadd.f32 %v440, %v441
    %v443 = vrot.slane %v442, 2
    %v444 = vadd.f32 %v442, %v443
    %v445 = vrot.slane %v444, 1
    %v446 = vadd.f32 %v444, %v445
    %v447 = vsel %vm87, %v407, 0.0
    %v448 = vrot.slane %v447, 4
    %v449 = vadd.f32 %v447, %v448
    %v450 = vrot.slane %v449, 2
    %v451 = vadd.f32 %v449, %v450
    %v452 = vrot.slane %v451, 1
    %v453 = vadd.f32 %v451, %v452
    %v454 = vsel %vm87, %v408, 0.0
    %v455 = vrot.slane %v454, 4
    %v456 = vadd.f32 %v454, %v455
    %v457 = vrot.slane %v456, 2
    %v458 = vadd.f32 %v456, %v457
    %v459 = vrot.slane %v458, 1
    %v460 = vadd.f32 %v458, %v459
    %v461 = vsel %vm87, %v409, 0.0
    %v462 = vrot.slane %v461, 4
    %v463 = vadd.f32 %v461, %v462
    %v464 = vrot.slane %v463, 2
    %v465 = vadd.f32 %v463, %v464
    %v466 = vrot.slane %v465, 1
    %v467 = vadd.f32 %v465, %v466
    %v468 = vsel %vm87, %v410, 0.0
    %v469 = vrot.slane %v468, 4
    %v470 = vadd.f32 %v468, %v469
    %v471 = vrot.slane %v470, 2
    %v472 = vadd.f32 %v470, %v471
    %v473 = vrot.slane %v472, 1
    %v474 = vadd.f32 %v472, %v473
    %v475 = vsel %vm87, %v411, 0.0
    %v476 = vrot.slane %v475, 4
    %v477 = vadd.f32 %v475, %v476
    %v478 = vrot.slane %v477, 2
    %v479 = vadd.f32 %v477, %v478
    %v480 = vrot.slane %v479, 1
    %v481 = vadd.f32 %v479, %v480
    %v482 = vsel %vm87, %v412, 0.0
    %v483 = vrot.slane %v482, 4
    %v484 = vadd.f32 %v482, %v483
    %v485 = vrot.slane %v484, 2
    %v486 = vadd.f32 %v484, %v485
    %v487 = vrot.slane %v486, 1
    %v488 = vadd.f32 %v486, %v487
    %v489 = vsel %vm87, %v413, 0.0
    %v490 = vrot.slane %v489, 4
    %v491 = vadd.f32 %v489, %v490
    %v492 = vrot.slane %v491, 2
    %v493 = vadd.f32 %v491, %v492
    %v494 = vrot.slane %v493, 1
    %v495 = vadd.f32 %v493, %v494
    %v496 = vsel %vm87, %v414, 0.0
    %v497 = vrot.slane %v496, 4
    %v498 = vadd.f32 %v496, %v497
    %v499 = vrot.slane %v498, 2
    %v500 = vadd.f32 %v498, %v499
    %v501 = vrot.slane %v500, 1
    %v502 = vadd.f32 %v500, %v501
    %v503 = vsel %vm87, %v415, 0.0
    %v504 = vrot.slane %v503, 4
    %v505 = vadd.f32 %v503, %v504
    %v506 = vrot.slane %v505, 2
    %v507 = vadd.f32 %v505, %v506
    %v508 = vrot.slane %v507, 1
    %v509 = vadd.f32 %v507, %v508
    %v510 = vsel %vm87, %v416, 0.0
    %v511 = vrot.slane %v510, 4
    %v512 = vadd.f32 %v510, %v511
    %v513 = vrot.slane %v512, 2
    %v514 = vadd.f32 %v512, %v513
    %v515 = vrot.slane %v514, 1
    %v516 = vadd.f32 %v514, %v515
    %v517 = vsel %vm87, %v417, 0.0
    %v518 = vrot.slane %v517, 4
    %v519 = vadd.f32 %v517, %v518
    %v520 = vrot.slane %v519, 2
    %v521 = vadd.f32 %v519, %v520
    %v522 = vrot.slane %v521, 1
    %v523 = vadd.f32 %v521, %v522
    %v524 = vsel %vm87, %v418, 0.0
    %v525 = vrot.slane %v524, 4
    %v526 = vadd.f32 %v524, %v525
    %v527 = vrot.slane %v526, 2
    %v528 = vadd.f32 %v526, %v527
    %v529 = vrot.slane %v528, 1
    %v530 = vadd.f32 %v528, %v529
    %v531 = vmul.f32 %v217, %v86
    %v532 = vmul.f32 %v219, %v86
    %v533 = vmul.f32 %v221, %v86
    %v534 = vmul.f32 %v223, %v86
    %v535 = vmul.f32 %v225, %v86
    %v536 = vmul.f32 %v227, %v86
    %v537 = vmul.f32 %v229, %v86
    %v538 = vmul.f32 %v231, %v86
    %v539 = vmul.f32 %v233, %v86
    %v540 = vmul.f32 %v235, %v86
    %v541 = vmul.f32 %v237, %v86
    %v542 = vmul.f32 %v239, %v86
    %v543 = vmul.f32 %v241, %v86
    %v544 = vmul.f32 %v243, %v86
    %v545 = vmul.f32 %v245, %v86
    %v546 = vmul.f32 %v247, %v86
    %v547 = vsel %vm87, %v531, 0.0
    %v548 = vrot.slane %v547, 4
    %v549 = vadd.f32 %v547, %v548
    %v550 = vrot.slane %v549, 2
    %v551 = vadd.f32 %v549, %v550
    %v552 = vrot.slane %v551, 1
    %v553 = vadd.f32 %v551, %v552
    %v554 = vsel %vm87, %v532, 0.0
    %v555 = vrot.slane %v554, 4
    %v556 = vadd.f32 %v554, %v555
    %v557 = vrot.slane %v556, 2
    %v558 = vadd.f32 %v556, %v557
    %v559 = vrot.slane %v558, 1
    %v560 = vadd.f32 %v558, %v559
    %v561 = vsel %vm87, %v533, 0.0
    %v562 = vrot.slane %v561, 4
    %v563 = vadd.f32 %v561, %v562
    %v564 = vrot.slane %v563, 2
    %v565 = vadd.f32 %v563, %v564
    %v566 = vrot.slane %v565, 1
    %v567 = vadd.f32 %v565, %v566
    %v568 = vsel %vm87, %v534, 0.0
    %v569 = vrot.slane %v568, 4
    %v570 = vadd.f32 %v568, %v569
    %v571 = vrot.slane %v570, 2
    %v572 = vadd.f32 %v570, %v571
    %v573 = vrot.slane %v572, 1
    %v574 = vadd.f32 %v572, %v573
    %v575 = vsel %vm87, %v535, 0.0
    %v576 = vrot.slane %v575, 4
    %v577 = vadd.f32 %v575, %v576
    %v578 = vrot.slane %v577, 2
    %v579 = vadd.f32 %v577, %v578
    %v580 = vrot.slane %v579, 1
    %v581 = vadd.f32 %v579, %v580
    %v582 = vsel %vm87, %v536, 0.0
    %v583 = vrot.slane %v582, 4
    %v584 = vadd.f32 %v582, %v583
    %v585 = vrot.slane %v584, 2
    %v586 = vadd.f32 %v584, %v585
    %v587 = vrot.slane %v586, 1
    %v588 = vadd.f32 %v586, %v587
    %v589 = vsel %vm87, %v537, 0.0
    %v590 = vrot.slane %v589, 4
    %v591 = vadd.f32 %v589, %v590
    %v592 = vrot.slane %v591, 2
    %v593 = vadd.f32 %v591, %v592
    %v594 = vrot.slane %v593, 1
    %v595 = vadd.f32 %v593, %v594
    %v596 = vsel %vm87, %v538, 0.0
    %v597 = vrot.slane %v596, 4
    %v598 = vadd.f32 %v596, %v597
    %v599 = vrot.slane %v598, 2
    %v600 = vadd.f32 %v598, %v599
    %v601 = vrot.slane %v600, 1
    %v602 = vadd.f32 %v600, %v601
    %v603 = vsel %vm87, %v539, 0.0
    %v604 = vrot.slane %v603, 4
    %v605 = vadd.f32 %v603, %v604
    %v606 = vrot.slane %v605, 2
    %v607 = vadd.f32 %v605, %v606
    %v608 = vrot.slane %v607, 1
    %v609 = vadd.f32 %v607, %v608
    %v610 = vsel %vm87, %v540, 0.0
    %v611 = vrot.slane %v610, 4
    %v612 = vadd.f32 %v610, %v611
    %v613 = vrot.slane %v612, 2
    %v614 = vadd.f32 %v612, %v613
    %v615 = vrot.slane %v614, 1
    %v616 = vadd.f32 %v614, %v615
    %v617 = vsel %vm87, %v541, 0.0
    %v618 = vrot.slane %v617, 4
    %v619 = vadd.f32 %v617, %v618
    %v620 = vrot.slane %v619, 2
    %v621 = vadd.f32 %v619, %v620
    %v622 = vrot.slane %v621, 1
    %v623 = vadd.f32 %v621, %v622
    %v624 = vsel %vm87, %v542, 0.0
    %v625 = vrot.slane %v624, 4
    %v626 = vadd.f32 %v624, %v625
    %v627 = vrot.slane %v626, 2
    %v628 = vadd.f32 %v626, %v627
    %v629 = vrot.slane %v628, 1
    %v630 = vadd.f32 %v628, %v629
    %v631 = vsel %vm87, %v543, 0.0
    %v632 = vrot.slane %v631, 4
    %v633 = vadd.f32 %v631, %v632
    %v634 = vrot.slane %v633, 2
    %v635 = vadd.f32 %v633, %v634
    %v636 = vrot.slane %v635, 1
    %v637 = vadd.f32 %v635, %v636
    %v638 = vsel %vm87, %v544, 0.0
    %v639 = vrot.slane %v638, 4
    %v640 = vadd.f32 %v638, %v639
    %v641 = vrot.slane %v640, 2
    %v642 = vadd.f32 %v640, %v641
    %v643 = vrot.slane %v642, 1
    %v644 = vadd.f32 %v642, %v643
    %v645 = vsel %vm87, %v545, 0.0
    %v646 = vrot.slane %v645, 4
    %v647 = vadd.f32 %v645, %v646
    %v648 = vrot.slane %v647, 2
    %v649 = vadd.f32 %v647, %v648
    %v650 = vrot.slane %v649, 1
    %v651 = vadd.f32 %v649, %v650
    %v652 = vsel %vm87, %v546, 0.0
    %v653 = vrot.slane %v652, 4
    %v654 = vadd.f32 %v652, %v653
    %v655 = vrot.slane %v654, 2
    %v656 = vadd.f32 %v654, %v655
    %v657 = vrot.slane %v656, 1
    %v658 = vadd.f32 %v656, %v657
    %v659 = vld [vmem:[%s3] sm:$0xff]
    %v660 = vld [vmem:[%s3 + $0x8] sm:$0xff]
    %v663 = vcombine.high %v400, %v400
    %v665 = vunpack.c.l.s4 1966171168
    %v666 = vunpack.c.0.s8 %v665
    %v667 = vlaneseq
    %v668 = vshrl.u32 %v667, 7
    %v669 = vsub.s32 %v666, %v668
    %v670 = vrot.slane %v400, %v669
    %v672 = vunpack.c.l.s4 1966171168
    %v673 = vunpack.c.0.s8 %v672
    %v674 = vlaneseq
    %v675 = vshrl.u32 %v674, 7
    %v676 = vsub.s32 %v673, %v675
    %v677 = vrot.slane %v663, %v676
    %v678 = vcombine.high %v670, %v670
    %v679 = vcombine.high %v677, %v677
    %v681 = vunpack.c.l.s4 1966171168
    %v682 = vunpack.c.0.s8 %v681
    %v683 = vlaneseq
    %v684 = vshrl.u32 %v683, 7
    %v685 = vsub.s32 %v682, %v684
    %v686 = vrot.slane %v670, %v685
    %v688 = vunpack.c.l.s4 1966171168
    %v689 = vunpack.c.0.s8 %v688
    %v690 = vlaneseq
    %v691 = vshrl.u32 %v690, 7
    %v692 = vsub.s32 %v689, %v691
    %v693 = vrot.slane %v677, %v692
    %v695 = vunpack.c.l.s4 1966171168
    %v696 = vunpack.c.0.s8 %v695
    %v697 = vlaneseq
    %v698 = vshrl.u32 %v697, 7
    %v699 = vsub.s32 %v696, %v698
    %v700 = vrot.slane %v678, %v699
    %v702 = vunpack.c.l.s4 1966171168
    %v703 = vunpack.c.0.s8 %v702
    %v704 = vlaneseq
    %v705 = vshrl.u32 %v704, 7
    %v706 = vsub.s32 %v703, %v705
    %v707 = vrot.slane %v679, %v706
    %v708 = vcombine.high %v686, %v686
    %v709 = vcombine.high %v693, %v693
    %v710 = vcombine.high %v700, %v700
    %v711 = vcombine.high %v707, %v707
    %v712 = vcombine.high %v402, %v402
    %v714 = vunpack.c.l.s4 1966171168
    %v715 = vunpack.c.0.s8 %v714
    %v716 = vlaneseq
    %v717 = vshrl.u32 %v716, 7
    %v718 = vsub.s32 %v715, %v717
    %v719 = vrot.slane %v402, %v718
    %v721 = vunpack.c.l.s4 1966171168
    %v722 = vunpack.c.0.s8 %v721
    %v723 = vlaneseq
    %v724 = vshrl.u32 %v723, 7
    %v725 = vsub.s32 %v722, %v724
    %v726 = vrot.slane %v712, %v725
    %v727 = vcombine.high %v719, %v719
    %v728 = vcombine.high %v726, %v726
    %v730 = vunpack.c.l.s4 1966171168
    %v731 = vunpack.c.0.s8 %v730
    %v732 = vlaneseq
    %v733 = vshrl.u32 %v732, 7
    %v734 = vsub.s32 %v731, %v733
    %v735 = vrot.slane %v719, %v734
    %v737 = vunpack.c.l.s4 1966171168
    %v738 = vunpack.c.0.s8 %v737
    %v739 = vlaneseq
    %v740 = vshrl.u32 %v739, 7
    %v741 = vsub.s32 %v738, %v740
    %v742 = vrot.slane %v726, %v741
    %v744 = vunpack.c.l.s4 1966171168
    %v745 = vunpack.c.0.s8 %v744
    %v746 = vlaneseq
    %v747 = vshrl.u32 %v746, 7
    %v748 = vsub.s32 %v745, %v747
    %v749 = vrot.slane %v727, %v748
    %v751 = vunpack.c.l.s4 1966171168
    %v752 = vunpack.c.0.s8 %v751
    %v753 = vlaneseq
    %v754 = vshrl.u32 %v753, 7
    %v755 = vsub.s32 %v752, %v754
    %v756 = vrot.slane %v728, %v755
    %v757 = vcombine.high %v735, %v735
    %v758 = vcombine.high %v742, %v742
    %v759 = vcombine.high %v749, %v749
    %v760 = vcombine.high %v756, %v756
    %v761 = vlaneseq
    %v762 = vshrl.u32 %v761, 7
    %v763 = vsub.s32 0, %v762
    %v764 = vrot.slane %v686, %v763
    %v765 = vlaneseq
    %v766 = vshrl.u32 %v765, 7
    %v767 = vsub.s32 0, %v766
    %v768 = vrot.slane %v700, %v767
    %v769 = vlaneseq
    %v770 = vshrl.u32 %v769, 7
    %v771 = vsub.s32 0, %v770
    %v772 = vrot.slane %v708, %v771
    %v773 = vlaneseq
    %v774 = vshrl.u32 %v773, 7
    %v775 = vsub.s32 0, %v774
    %v776 = vrot.slane %v710, %v775
    %v777 = vlaneseq
    %v778 = vshrl.u32 %v777, 7
    %v779 = vsub.s32 0, %v778
    %v780 = vrot.slane %v693, %v779
    %v781 = vlaneseq
    %v782 = vshrl.u32 %v781, 7
    %v783 = vsub.s32 0, %v782
    %v784 = vrot.slane %v707, %v783
    %v785 = vlaneseq
    %v786 = vshrl.u32 %v785, 7
    %v787 = vsub.s32 0, %v786
    %v788 = vrot.slane %v709, %v787
    %v789 = vlaneseq
    %v790 = vshrl.u32 %v789, 7
    %v791 = vsub.s32 0, %v790
    %v792 = vrot.slane %v711, %v791
    %v793 = vlaneseq
    %v794 = vshrl.u32 %v793, 7
    %v795 = vsub.s32 0, %v794
    %v796 = vrot.slane %v735, %v795
    %v797 = vlaneseq
    %v798 = vshrl.u32 %v797, 7
    %v799 = vsub.s32 0, %v798
    %v800 = vrot.slane %v749, %v799
    %v801 = vlaneseq
    %v802 = vshrl.u32 %v801, 7
    %v803 = vsub.s32 0, %v802
    %v804 = vrot.slane %v757, %v803
    %v805 = vlaneseq
    %v806 = vshrl.u32 %v805, 7
    %v807 = vsub.s32 0, %v806
    %v808 = vrot.slane %v759, %v807
    %v809 = vlaneseq
    %v810 = vshrl.u32 %v809, 7
    %v811 = vsub.s32 0, %v810
    %v812 = vrot.slane %v742, %v811
    %v813 = vlaneseq
    %v814 = vshrl.u32 %v813, 7
    %v815 = vsub.s32 0, %v814
    %v816 = vrot.slane %v756, %v815
    %v817 = vlaneseq
    %v818 = vshrl.u32 %v817, 7
    %v819 = vsub.s32 0, %v818
    %v820 = vrot.slane %v758, %v819
    %v821 = vlaneseq
    %v822 = vshrl.u32 %v821, 7
    %v823 = vsub.s32 0, %v822
    %v824 = vrot.slane %v760, %v823
    %v841 = vmul.f32 %v217, %v764
    %v842 = vmul.f32 %v219, %v768
    %v843 = vmul.f32 %v221, %v772
    %v844 = vmul.f32 %v223, %v776
    %v845 = vmul.f32 %v225, %v780
    %v846 = vmul.f32 %v227, %v784
    %v847 = vmul.f32 %v229, %v788
    %v848 = vmul.f32 %v231, %v792
    %v849 = vmul.f32 %v233, %v796
    %v850 = vmul.f32 %v235, %v800
    %v851 = vmul.f32 %v237, %v804
    %v852 = vmul.f32 %v239, %v808
    %v853 = vmul.f32 %v241, %v812
    %v854 = vmul.f32 %v243, %v816
    %v855 = vmul.f32 %v245, %v820
    %v856 = vmul.f32 %v247, %v824
    %v857 = vsel %vm87, %v841, 0.0
    %858 = vadd.xlane.f32.xlu0 %v857
    %v859 = vpop.xlane.xlu0 %858
    %v860 = vsel %vm87, %v842, 0.0
    %861 = vadd.xlane.f32.xlu0 %v860
    %v862 = vpop.xlane.xlu0 %861
    %v863 = vsel %vm87, %v843, 0.0
    %864 = vadd.xlane.f32.xlu0 %v863
    %v865 = vpop.xlane.xlu0 %864
    %v866 = vsel %vm87, %v844, 0.0
    %867 = vadd.xlane.f32.xlu0 %v866
    %v868 = vpop.xlane.xlu0 %867
    %v869 = vsel %vm87, %v845, 0.0
    %870 = vadd.xlane.f32.xlu0 %v869
    %v871 = vpop.xlane.xlu0 %870
    %v872 = vsel %vm87, %v846, 0.0
    %873 = vadd.xlane.f32.xlu0 %v872
    %v874 = vpop.xlane.xlu0 %873
    %v875 = vsel %vm87, %v847, 0.0
    %876 = vadd.xlane.f32.xlu0 %v875
    %v877 = vpop.xlane.xlu0 %876
    %v878 = vsel %vm87, %v848, 0.0
    %879 = vadd.xlane.f32.xlu0 %v878
    %v880 = vpop.xlane.xlu0 %879
    %v881 = vsel %vm87, %v849, 0.0
    %882 = vadd.xlane.f32.xlu0 %v881
    %v883 = vpop.xlane.xlu0 %882
    %v884 = vsel %vm87, %v850, 0.0
    %885 = vadd.xlane.f32.xlu0 %v884
    %v886 = vpop.xlane.xlu0 %885
    %v887 = vsel %vm87, %v851, 0.0
    %888 = vadd.xlane.f32.xlu0 %v887
    %v889 = vpop.xlane.xlu0 %888
    %v890 = vsel %vm87, %v852, 0.0
    %891 = vadd.xlane.f32.xlu0 %v890
    %v892 = vpop.xlane.xlu0 %891
    %v893 = vsel %vm87, %v853, 0.0
    %894 = vadd.xlane.f32.xlu0 %v893
    %v895 = vpop.xlane.xlu0 %894
    %v896 = vsel %vm87, %v854, 0.0
    %897 = vadd.xlane.f32.xlu0 %v896
    %v898 = vpop.xlane.xlu0 %897
    %v899 = vsel %vm87, %v855, 0.0
    %900 = vadd.xlane.f32.xlu0 %v899
    %v901 = vpop.xlane.xlu0 %900
    %v902 = vsel %vm87, %v856, 0.0
    %903 = vadd.xlane.f32.xlu0 %v902
    %v904 = vpop.xlane.xlu0 %903
    %v921 = vlaneseq
    %v922 = vand.u32 %v921, 127
    %v923 = vlaneseq
    %v924 = vshrl.u32 %v923, 7
    %v925 = vsub.s32 %v922, %v924
    %v926 = vrot.slane %v859, %v925
    %v927 = vlaneseq
    %v928 = vshrl.u32 %v927, 7
    %v929 = vsub.s32 %v922, %v928
    %v930 = vrot.slane %v862, %v929
    %v931 = vlaneseq
    %v932 = vshrl.u32 %v931, 7
    %v933 = vsub.s32 %v922, %v932
    %v934 = vrot.slane %v865, %v933
    %v935 = vlaneseq
    %v936 = vshrl.u32 %v935, 7
    %v937 = vsub.s32 %v922, %v936
    %v938 = vrot.slane %v868, %v937
    %v939 = vlaneseq
    %v940 = vshrl.u32 %v939, 7
    %v941 = vsub.s32 %v922, %v940
    %v942 = vrot.slane %v871, %v941
    %v943 = vlaneseq
    %v944 = vshrl.u32 %v943, 7
    %v945 = vsub.s32 %v922, %v944
    %v946 = vrot.slane %v874, %v945
    %v947 = vlaneseq
    %v948 = vshrl.u32 %v947, 7
    %v949 = vsub.s32 %v922, %v948
    %v950 = vrot.slane %v877, %v949
    %v951 = vlaneseq
    %v952 = vshrl.u32 %v951, 7
    %v953 = vsub.s32 %v922, %v952
    %v954 = vrot.slane %v880, %v953
    %v955 = vlaneseq
    %v956 = vshrl.u32 %v955, 7
    %v957 = vsub.s32 %v922, %v956
    %v958 = vrot.slane %v883, %v957
    %v959 = vlaneseq
    %v960 = vshrl.u32 %v959, 7
    %v961 = vsub.s32 %v922, %v960
    %v962 = vrot.slane %v886, %v961
    %v963 = vlaneseq
    %v964 = vshrl.u32 %v963, 7
    %v965 = vsub.s32 %v922, %v964
    %v966 = vrot.slane %v889, %v965
    %v967 = vlaneseq
    %v968 = vshrl.u32 %v967, 7
    %v969 = vsub.s32 %v922, %v968
    %v970 = vrot.slane %v892, %v969
    %v971 = vlaneseq
    %v972 = vshrl.u32 %v971, 7
    %v973 = vsub.s32 %v922, %v972
    %v974 = vrot.slane %v895, %v973
    %v975 = vlaneseq
    %v976 = vshrl.u32 %v975, 7
    %v977 = vsub.s32 %v922, %v976
    %v978 = vrot.slane %v898, %v977
    %v979 = vlaneseq
    %v980 = vshrl.u32 %v979, 7
    %v981 = vsub.s32 %v922, %v980
    %v982 = vrot.slane %v901, %v981
    %v983 = vlaneseq
    %v984 = vshrl.u32 %v983, 7
    %v985 = vsub.s32 %v922, %v984
    %v986 = vrot.slane %v904, %v985
    %v987 = vsel %vm376, %v930, %v926
    %v988 = vsel %vm378, %v934, %v987
    %v989 = vsel %vm380, %v938, %v988
    %v990 = vsel %vm382, %v942, %v989
    %v991 = vsel %vm384, %v946, %v990
    %v992 = vsel %vm386, %v950, %v991
    %v993 = vsel %vm388, %v954, %v992
    %v994 = vsel %vm376, %v962, %v958
    %v995 = vsel %vm378, %v966, %v994
    %v996 = vsel %vm380, %v970, %v995
    %v997 = vsel %vm382, %v974, %v996
    %v998 = vsel %vm384, %v978, %v997
    %v999 = vsel %vm386, %v982, %v998
    %v1000 = vsel %vm388, %v986, %v999
    %v1003 = vadd.f32 %v659, %v993
    %v1004 = vadd.f32 %v660, %v1000
    %vm1005 = vcmask 64512
    %1006 = vst.msk [vmem:[%s3] sm:$0xff] %vm1005, %v1003
    %1007 = vst.msk [vmem:[%s3 + $0x8] sm:$0xff] %vm1005, %v1004
    %v1008 = vld [vmem:[%s4] sm:$0xff]
    %v1009 = vld [vmem:[%s4 + $0x8] sm:$0xff]
    %v1026 = vsel %vm376, %v560, %v553
    %v1027 = vsel %vm378, %v567, %v1026
    %v1028 = vsel %vm380, %v574, %v1027
    %v1029 = vsel %vm382, %v581, %v1028
    %v1030 = vsel %vm384, %v588, %v1029
    %v1031 = vsel %vm386, %v595, %v1030
    %v1032 = vsel %vm388, %v602, %v1031
    %v1033 = vsel %vm376, %v616, %v609
    %v1034 = vsel %vm378, %v623, %v1033
    %v1035 = vsel %vm380, %v630, %v1034
    %v1036 = vsel %vm382, %v637, %v1035
    %v1037 = vsel %vm384, %v644, %v1036
    %v1038 = vsel %vm386, %v651, %v1037
    %v1039 = vsel %vm388, %v658, %v1038
    %v1042 = vmul.f32 %v400, %v1032
    %v1043 = vmul.f32 %v402, %v1039
    %v1044 = vsel %vm87, %v1042, 0.0
    %1045 = vadd.xlane.f32.xlu0 %v1044
    %v1046 = vpop.xlane.xlu0 %1045
    %v1047 = vsel %vm87, %v1043, 0.0
    %1048 = vadd.xlane.f32.xlu0 %v1047
    %v1049 = vpop.xlane.xlu0 %1048
    %v1050 = vadd.f32 %v1008, %v1046
    %v1051 = vadd.f32 %v1009, %v1049
    %vm1052 = vcmask 7168
    %1053 = vst.msk [vmem:[%s4] sm:$0xff] %vm1052, %v1050
    %1054 = vst.msk [vmem:[%s4 + $0x8] sm:$0xff] %vm1052, %v1051
    %v1055 = vld [vmem:[%s5] sm:$0xff]
    %v1056 = vld [vmem:[%s5 + $0x8] sm:$0xff]
    %v1057 = vlog2.pop %v254
    %v1058 = vmul.f32 %v1057, 0.6931472
    %v1059 = vlog2.pop %v261
    %v1060 = vmul.f32 %v1059, 0.6931472
    %v1061 = vlog2.pop %v268
    %v1062 = vmul.f32 %v1061, 0.6931472
    %v1063 = vlog2.pop %v275
    %v1064 = vmul.f32 %v1063, 0.6931472
    %v1065 = vlog2.pop %v282
    %v1066 = vmul.f32 %v1065, 0.6931472
    %v1067 = vlog2.pop %v289
    %v1068 = vmul.f32 %v1067, 0.6931472
    %v1069 = vlog2.pop %v296
    %v1070 = vmul.f32 %v1069, 0.6931472
    %v1071 = vlog2.pop %v303
    %v1072 = vmul.f32 %v1071, 0.6931472
    %v1073 = vlog2.pop %v310
    %v1074 = vmul.f32 %v1073, 0.6931472
    %v1075 = vlog2.pop %v317
    %v1076 = vmul.f32 %v1075, 0.6931472
    %v1077 = vlog2.pop %v324
    %v1078 = vmul.f32 %v1077, 0.6931472
    %v1079 = vlog2.pop %v331
    %v1080 = vmul.f32 %v1079, 0.6931472
    %v1081 = vlog2.pop %v338
    %v1082 = vmul.f32 %v1081, 0.6931472
    %v1083 = vlog2.pop %v345
    %v1084 = vmul.f32 %v1083, 0.6931472
    %v1085 = vlog2.pop %v352
    %v1086 = vmul.f32 %v1085, 0.6931472
    %v1087 = vlog2.pop %v359
    %v1088 = vmul.f32 %v1087, 0.6931472
    %v1089 = vadd.f32 %v1058, %v94
    %v1090 = vadd.f32 %v1060, %v101
    %v1091 = vadd.f32 %v1062, %v108
    %v1092 = vadd.f32 %v1064, %v115
    %v1093 = vadd.f32 %v1066, %v122
    %v1094 = vadd.f32 %v1068, %v129
    %v1095 = vadd.f32 %v1070, %v136
    %v1096 = vadd.f32 %v1072, %v143
    %v1097 = vadd.f32 %v1074, %v150
    %v1098 = vadd.f32 %v1076, %v157
    %v1099 = vadd.f32 %v1078, %v164
    %v1100 = vadd.f32 %v1080, %v171
    %v1101 = vadd.f32 %v1082, %v178
    %v1102 = vadd.f32 %v1084, %v185
    %v1103 = vadd.f32 %v1086, %v192
    %v1104 = vadd.f32 %v1088, %v199
    %v1121 = vsel %vm376, %v1090, %v1089
    %v1122 = vsel %vm378, %v1091, %v1121
    %v1123 = vsel %vm380, %v1092, %v1122
    %v1124 = vsel %vm382, %v1093, %v1123
    %v1125 = vsel %vm384, %v1094, %v1124
    %v1126 = vsel %vm386, %v1095, %v1125
    %v1127 = vsel %vm388, %v1096, %v1126
    %v1128 = vsel %vm376, %v1098, %v1097
    %v1129 = vsel %vm378, %v1099, %v1128
    %v1130 = vsel %vm380, %v1100, %v1129
    %v1131 = vsel %vm382, %v1101, %v1130
    %v1132 = vsel %vm384, %v1102, %v1131
    %v1133 = vsel %vm386, %v1103, %v1132
    %v1134 = vsel %vm388, %v1104, %v1133
    %v1137 = vmul.f32 %v84, %v1127
    %v1138 = vmul.f32 %v85, %v1134
    %v1155 = vsel %vm376, %v432, %v425
    %v1156 = vsel %vm378, %v439, %v1155
    %v1157 = vsel %vm380, %v446, %v1156
    %v1158 = vsel %vm382, %v453, %v1157
    %v1159 = vsel %vm384, %v460, %v1158
    %v1160 = vsel %vm386, %v467, %v1159
    %v1161 = vsel %vm388, %v474, %v1160
    %v1162 = vsel %vm376, %v488, %v481
    %v1163 = vsel %vm378, %v495, %v1162
    %v1164 = vsel %vm380, %v502, %v1163
    %v1165 = vsel %vm382, %v509, %v1164
    %v1166 = vsel %vm384, %v516, %v1165
    %v1167 = vsel %vm386, %v523, %v1166
    %v1168 = vsel %vm388, %v530, %v1167
    %v1171 = vmul.f32 %v400, %v1161
    %v1172 = vmul.f32 %v402, %v1168
    %v1173 = vsub.f32 %v1137, %v1171
    %v1174 = vsub.f32 %v1138, %v1172
    %v1175 = vsel %vm87, %v1173, 0.0
    %1176 = vadd.xlane.f32.xlu0 %v1175
    %v1177 = vpop.xlane.xlu0 %1176
    %v1178 = vsel %vm87, %v1174, 0.0
    %1179 = vadd.xlane.f32.xlu0 %v1178
    %v1180 = vpop.xlane.xlu0 %1179
    %v1181 = vadd.f32 %v1055, %v1177
    %v1182 = vadd.f32 %v1056, %v1180
    %1183 = vst.msk [vmem:[%s5] sm:$0xff] %vm1052, %v1181
    %1184 = vst.msk [vmem:[%s5 + $0x8] sm:$0xff] %vm1052, %v1182
    // Predicated region
    $region30: #{tpu_custom_call.1} parent=1 // pred_check
      _
    $region31: #{tpu_custom_call.1} parent=1 // pred_check_branch
      %1186 = sbr.rel (0) target = $region33
    $region32: #{tpu_custom_call.1} parent=1 // pred_region
      _
    $region33: #{tpu_custom_call.1} parent=1 // pred_fallthru
      _
    // Predicated region
    $region34: #{tpu_custom_call.1} parent=1 // pred_check
      _
    $region35: #{tpu_custom_call.1} parent=1 // pred_check_branch
      %1188 = sbr.rel (0) target = $region37
    $region36: #{tpu_custom_call.1} parent=1 // pred_region
      _
    $region37: #{tpu_custom_call.1} parent=1 // pred_fallthru
      _
    // Predicated region
    $region38: #{tpu_custom_call.1} parent=1 // pred_check
      _
    $region39: #{tpu_custom_call.1} parent=1 // pred_check_branch
      %1190 = sbr.rel (0) target = $region41
    $region40: #{tpu_custom_call.1} parent=1 // pred_region
      _
    $region41: #{tpu_custom_call.1} parent=1 // pred_fallthru
      _
    // Predicated region
    $region42: #{tpu_custom_call.1} parent=1 // pred_check
      _
    $region43: #{tpu_custom_call.1} parent=1 // pred_check_branch
      %1192 = sbr.rel (0) target = $region45
    $region44: #{tpu_custom_call.1} parent=1 // pred_region
      _
    $region45: #{tpu_custom_call.1} parent=1 // pred_fallthru
      _
    // Predicated region
    $region46: #{tpu_custom_call.1} parent=1 // pred_check
      _
    $region47: #{tpu_custom_call.1} parent=1 // pred_check_branch
      %1194 = sbr.rel (0) target = $region49
    $region48: #{tpu_custom_call.1} parent=1 // pred_region
      _
    $region49: #{tpu_custom_call.1} parent=1 // pred_fallthru
      _
    // Predicated region
    $region50: #{tpu_custom_call.1} parent=1 // pred_check
      _
    $region51: #{tpu_custom_call.1} parent=1 // pred_check_branch
      %1196 = sbr.rel (0) target = $region53
    $region52: #{tpu_custom_call.1} parent=1 // pred_region
      _
    $region53: #{tpu_custom_call.1} parent=1 // pred_fallthru
      _
    %1197 = vsyncpa [#allocation3], 1
    %1198 = vsyncpa [#allocation5], 1

</llo_original>
